<compile_context>
chip_gen: v6e
topology: v6e:2x2x1
jax: 0.10.0
libtpu: 0.0.40
codegen_flags: <defaults>
</compile_context>

<pallas_src>
import jax
import jax.numpy as jnp
from jax.experimental import pallas as pl
from jax.experimental.pallas import tpu as pltpu


def _round_up(x, m):
    return ((x + m - 1) // m) * m


# -----------------------------------------------------------------------------
# Path 1: per-row HBM -> out_ref DMA gather (table stays in HBM).
# -----------------------------------------------------------------------------
def _dma_gather_kernel(idx_sref, table_hbm, out_ref, copy_sem):
    """Gather `rows` embedding rows selected by SMEM indices via direct DMAs.

    idx_sref  : SMEM (padded_B,) int32     -- scalar-prefetched class ids
    table_hbm : HBM  (n_classes, D)        -- raw ref, manually DMA'd
    out_ref   : VMEM (rows, D)             -- output block; DMAs land here
    copy_sem  : shared DMA semaphore
    """
    rows = out_ref.shape[0]
    base = pl.program_id(0) * rows

    # Issue every row DMA straight into the output block (no staging buffer).
    # Static Python loop == fully unrolled issue phase, so the SMEM index
    # read, address computation and descriptor push for row r+1 co-schedule
    # with row r instead of serializing behind a loop-carried dependency.
    for r in range(rows):
        row = idx_sref[base + r]
        pltpu.make_async_copy(table_hbm.at[row], out_ref.at[r], copy_sem).start()

    # Wait for ALL row DMAs before the kernel body returns (the pipelined
    # writeback of out_ref happens only after that).
    #
    # NOTE(correctness): copy_sem is shared by all rows, so an individual
    # wait does NOT guarantee that row r in particular has landed -- it only
    # consumes one row-copy's worth of completion count (completions may be
    # out of order).  This is correct solely because nothing reads or writes
    # out_ref until all `rows` waits have been consumed.  Do not interleave
    # per-row consumers here; switch to a per-row semaphore array if the
    # structure ever changes.
    @pl.loop(0, rows)
    def _wait(_r):
        # The wait descriptor only needs a matching shape + semaphore.
        pltpu.make_async_copy(table_hbm.at[0], out_ref.at[0], copy_sem).wait()


# -----------------------------------------------------------------------------
# Path 2: one bulk table DMA (auto-pipelined BlockSpec) + in-VMEM row gather.
# -----------------------------------------------------------------------------
def _vmem_gather_kernel(idx_sref, table_ref, out_ref):
    """Whole table is DMA'd to VMEM once; gather rows with VMEM loads."""
    rows = out_ref.shape[0]
    base = pl.program_id(0) * rows
    # Static row index for the store; dynamic (SMEM-scalar) index along the
    # table's leading axis for the load.
    for r in range(rows):
        out_ref[r, :] = table_ref[idx_sref[base + r], :]


# -----------------------------------------------------------------------------
# Wrapper / dispatch.
# -----------------------------------------------------------------------------
_DMA_ROWS_CAP = 256                    # per-block row cap for the DMA path
_BULK_ROWS_CAP = 128                   # per-block row cap for the bulk path
_BULK_TABLE_BYTES = 6 * 1024 * 1024    # table must fit comfortably in VMEM


def _pick_block(padded_b, cap):
    """Pick rows_per_block (multiple of 8, >=64 when grid>1) and final padded_b."""
    if padded_b <= cap:
        return padded_b, padded_b          # single grid step: one DMA burst
    for bs in range(cap, 63, -8):
        if padded_b % bs == 0:
            return bs, padded_b            # no padding waste, big blocks
    # No reasonable divisor: pad up to a multiple of the cap instead of
    # running many tiny grid steps.
    return cap, _round_up(padded_b, cap)


def class_embedding_lookup(table, idx):
    """Pallas gather: returns table[idx] with shape (B, embed_dim)."""
    n_classes, embed_dim = table.shape
    (batch,) = idx.shape

    # Lane-dense output: pad embed_dim up to a multiple of 128 if needed,
    # otherwise the output writeback degrades to masked partial stores.
    padded_d = _round_up(embed_dim, 128)
    if padded_d != embed_dim:
        table = jnp.pad(table, ((0, 0), (0, padded_d - embed_dim)))

    # NOTE: PyTorch nn.Embedding raises on out-of-range ids; here they are
    # clamped (jnp.take semantics), which also keeps every manual DMA in bounds.
    idx = jnp.clip(idx.astype(jnp.int32), 0, n_classes - 1)

    # Pad the batch only to the 8-row f32 sublane granularity (not 128).
    padded_b = _round_up(batch, 8)
    table_bytes = n_classes * padded_d * jnp.dtype(table.dtype).itemsize

    # Dispatch: many sub-KB row DMAs only win while the gathered bytes stay
    # well below the table size.  Once B approaches n_classes (e.g. CFG
    # batches repeating the unconditional class) one bulk table DMA plus an
    # in-VMEM gather is a pure latency win.
    use_bulk = (table_bytes <= _BULK_TABLE_BYTES) and (2 * padded_b >= n_classes)

    cap = _BULK_ROWS_CAP if use_bulk else _DMA_ROWS_CAP
    rows_per_block, padded_b = _pick_block(padded_b, cap)
    if padded_b != batch:
        idx = jnp.pad(idx, (0, padded_b - batch))   # pad with class 0 (valid row)

    grid = (padded_b // rows_per_block,)
    # The 2-TC (v7x) split only pays off with >=2 real blocks of work; with a
    # single block the annotation is inert anyway.
    dim_sem = ("parallel",) if grid[0] > 1 else ("arbitrary",)

    out_shape = jax.ShapeDtypeStruct((padded_b, padded_d), table.dtype)
    out_spec = pl.BlockSpec((rows_per_block, padded_d), lambda i, idx_ref: (i, 0))

    if use_bulk:
        out = pl.pallas_call(
            _vmem_gather_kernel,
            out_shape=out_shape,
            grid_spec=pltpu.PrefetchScalarGridSpec(
                num_scalar_prefetch=1,                         # idx -> SMEM
                grid=grid,
                in_specs=[pl.BlockSpec((n_classes, padded_d),
                                       lambda i, idx_ref: (0, 0))],  # one bulk DMA
                out_specs=out_spec,
            ),
            compiler_params=pltpu.CompilerParams(dimension_semantics=dim_sem),
        )(idx, table)
    else:
        out = pl.pallas_call(
            _dma_gather_kernel,
            out_shape=out_shape,
            grid_spec=pltpu.PrefetchScalarGridSpec(
                num_scalar_prefetch=1,                         # idx -> SMEM
                grid=grid,
                in_specs=[pl.BlockSpec(memory_space=pl.ANY)],  # table stays in HBM
                out_specs=out_spec,
                scratch_shapes=[pltpu.SemaphoreType.DMA(())],
            ),
            compiler_params=pltpu.CompilerParams(dimension_semantics=dim_sem),
        )(idx, table)

    if padded_b != batch or padded_d != embed_dim:
        out = out[:batch, :embed_dim]   # only pays an extra copy when padded
    return out


class ClassEmbedder:
    """JAX/Pallas equivalent of the PyTorch ClassEmbedder."""

    def __init__(self, embed_dim, n_classes=1000, key='class', *, rng_key=None):
        self.key = key
        self.n_classes = n_classes
        self.embed_dim = embed_dim
        if rng_key is None:
            rng_key = jax.random.PRNGKey(0)
        # nn.Embedding default init: N(0, 1)
        self.embedding_table = jax.random.normal(
            rng_key, (n_classes, embed_dim), dtype=jnp.float32)

    def __call__(self, batch, key=None):
        if key is None:
            key = self.key
        idx = batch[key]                                          # (B,)
        emb = class_embedding_lookup(self.embedding_table, idx)   # (B, D)
        return emb[:, None, :]                                    # (B, 1, D) as in PyTorch


if __name__ == "__main__":
    root = jax.random.PRNGKey(0)
    k_emb1, k_cls1, k_emb2, k_cls2 = jax.random.split(root, 4)

    # --- Test 1: module forward, small batch vs larger class count ---------
    # (exercises the per-row DMA-gather path, grid collapsed to one step,
    #  and the batch-padding / slice path since 4 < 8)
    batch_size, n_classes, embed_dim = 4, 64, 128
    embedder = ClassEmbedder(embed_dim=embed_dim, n_classes=n_classes,
                             key='class', rng_key=k_emb1)
    class_ids = jax.random.randint(k_cls1, (batch_size,), 0, n_classes,
                                   dtype=jnp.int32)
    c = embedder({'class': class_ids})
    c = jax.block_until_ready(c)
    ref = jnp.take(embedder.embedding_table, class_ids, axis=0)[:, None, :]
    assert c.shape == (batch_size, 1, embed_dim), c.shape
    assert jnp.allclose(c, ref, atol=0.0), "DMA-gather path mismatch vs reference"

    # --- Test 2: batch >= n_classes (classifier-free-guidance style) -------
    # (exercises the bulk table-DMA + in-VMEM gather path)
    batch_size2, n_classes2, embed_dim2 = 48, 16, 256
    table2 = jax.random.normal(k_emb2, (n_classes2, embed_dim2), jnp.float32)
    ids2 = jax.random.randint(k_cls2, (batch_size2,), 0, n_classes2,
                              dtype=jnp.int32)
    out2 = jax.block_until_ready(class_embedding_lookup(table2, ids2))
    ref2 = jnp.take(table2, ids2, axis=0)
    assert out2.shape == (batch_size2, embed_dim2), out2.shape
    assert jnp.allclose(out2, ref2, atol=0.0), "bulk path mismatch vs reference"

    print("KERNEL_OK")
</pallas_src>

<mosaic_0001>
module attributes {stable_mosaic.version = 11 : i64} {
  func.func @_dma_gather_kernel(%arg0: i32, %arg1: memref<8xi32, #tpu.memory_space<smem>>, %arg2: memref<64x128xf32, #tpu.memory_space<any>>, %arg3: memref<8x128xf32, #tpu.memory_space<vmem>>, %arg4: memref<!tpu.dma_semaphore, #tpu.memory_space<semaphore_mem>>) attributes {dimension_semantics = [#tpu.dimension_semantics<arbitrary>], iteration_bounds = array<i64: 1>, scalar_prefetch = 1 : i64, scratch_operands = 1 : i64, tpu.core_type = #tpu.core_type<tc>, window_params = [{}, {transform_indices = @transform_1, window_bounds = array<i64: 8, 128>}]} {
    %c8_i32 = arith.constant 8 : i32
    %0 = arith.muli %arg0, %c8_i32 : i32
    %c0_i32 = arith.constant 0 : i32
    %1 = arith.addi %0, %c0_i32 : i32
    %2 = arith.index_cast %1 : i32 to index
    %3 = memref.load %arg1[%2] : memref<8xi32, #tpu.memory_space<smem>>
    %c0_i32_0 = arith.constant 0 : i32
    %c0_i32_1 = arith.constant 0 : i32
    %4 = tpu.memref_slice %arg2[%3, %c0_i32_1] : memref<64x128xf32, #tpu.memory_space<any>> -> memref<1x128xf32, #tpu.memory_space<any>>
    %5 = tpu.memref_squeeze %4 : memref<1x128xf32, #tpu.memory_space<any>> -> memref<128xf32, #tpu.memory_space<any>>
    %c0_i32_2 = arith.constant 0 : i32
    %6 = tpu.memref_slice %arg3[%c0_i32_0, %c0_i32_2] : memref<8x128xf32, #tpu.memory_space<vmem>> -> memref<1x128xf32, #tpu.memory_space<vmem>>
    %7 = tpu.memref_squeeze %6 : memref<1x128xf32, #tpu.memory_space<vmem>> -> memref<128xf32, #tpu.memory_space<vmem>>
    tpu.enqueue_dma source(%5 : memref<128xf32, #tpu.memory_space<any>>) target(%7 : memref<128xf32, #tpu.memory_space<vmem>>) target_semaphore(%arg4 : memref<!tpu.dma_semaphore, #tpu.memory_space<semaphore_mem>>)
    %c1_i32 = arith.constant 1 : i32
    %8 = arith.addi %0, %c1_i32 : i32
    %9 = arith.index_cast %8 : i32 to index
    %10 = memref.load %arg1[%9] : memref<8xi32, #tpu.memory_space<smem>>
    %c1_i32_3 = arith.constant 1 : i32
    %c0_i32_4 = arith.constant 0 : i32
    %11 = tpu.memref_slice %arg2[%10, %c0_i32_4] : memref<64x128xf32, #tpu.memory_space<any>> -> memref<1x128xf32, #tpu.memory_space<any>>
    %12 = tpu.memref_squeeze %11 : memref<1x128xf32, #tpu.memory_space<any>> -> memref<128xf32, #tpu.memory_space<any>>
    %c0_i32_5 = arith.constant 0 : i32
    %13 = tpu.memref_slice %arg3[%c1_i32_3, %c0_i32_5] : memref<8x128xf32, #tpu.memory_space<vmem>> -> memref<1x128xf32, #tpu.memory_space<vmem>>
    %14 = tpu.memref_squeeze %13 : memref<1x128xf32, #tpu.memory_space<vmem>> -> memref<128xf32, #tpu.memory_space<vmem>>
    tpu.enqueue_dma source(%12 : memref<128xf32, #tpu.memory_space<any>>) target(%14 : memref<128xf32, #tpu.memory_space<vmem>>) target_semaphore(%arg4 : memref<!tpu.dma_semaphore, #tpu.memory_space<semaphore_mem>>)
    %c2_i32 = arith.constant 2 : i32
    %15 = arith.addi %0, %c2_i32 : i32
    %16 = arith.index_cast %15 : i32 to index
    %17 = memref.load %arg1[%16] : memref<8xi32, #tpu.memory_space<smem>>
    %c2_i32_6 = arith.constant 2 : i32
    %c0_i32_7 = arith.constant 0 : i32
    %18 = tpu.memref_slice %arg2[%17, %c0_i32_7] : memref<64x128xf32, #tpu.memory_space<any>> -> memref<1x128xf32, #tpu.memory_space<any>>
    %19 = tpu.memref_squeeze %18 : memref<1x128xf32, #tpu.memory_space<any>> -> memref<128xf32, #tpu.memory_space<any>>
    %c0_i32_8 = arith.constant 0 : i32
    %20 = tpu.memref_slice %arg3[%c2_i32_6, %c0_i32_8] : memref<8x128xf32, #tpu.memory_space<vmem>> -> memref<1x128xf32, #tpu.memory_space<vmem>>
    %21 = tpu.memref_squeeze %20 : memref<1x128xf32, #tpu.memory_space<vmem>> -> memref<128xf32, #tpu.memory_space<vmem>>
    tpu.enqueue_dma source(%19 : memref<128xf32, #tpu.memory_space<any>>) target(%21 : memref<128xf32, #tpu.memory_space<vmem>>) target_semaphore(%arg4 : memref<!tpu.dma_semaphore, #tpu.memory_space<semaphore_mem>>)
    %c3_i32 = arith.constant 3 : i32
    %22 = arith.addi %0, %c3_i32 : i32
    %23 = arith.index_cast %22 : i32 to index
    %24 = memref.load %arg1[%23] : memref<8xi32, #tpu.memory_space<smem>>
    %c3_i32_9 = arith.constant 3 : i32
    %c0_i32_10 = arith.constant 0 : i32
    %25 = tpu.memref_slice %arg2[%24, %c0_i32_10] : memref<64x128xf32, #tpu.memory_space<any>> -> memref<1x128xf32, #tpu.memory_space<any>>
    %26 = tpu.memref_squeeze %25 : memref<1x128xf32, #tpu.memory_space<any>> -> memref<128xf32, #tpu.memory_space<any>>
    %c0_i32_11 = arith.constant 0 : i32
    %27 = tpu.memref_slice %arg3[%c3_i32_9, %c0_i32_11] : memref<8x128xf32, #tpu.memory_space<vmem>> -> memref<1x128xf32, #tpu.memory_space<vmem>>
    %28 = tpu.memref_squeeze %27 : memref<1x128xf32, #tpu.memory_space<vmem>> -> memref<128xf32, #tpu.memory_space<vmem>>
    tpu.enqueue_dma source(%26 : memref<128xf32, #tpu.memory_space<any>>) target(%28 : memref<128xf32, #tpu.memory_space<vmem>>) target_semaphore(%arg4 : memref<!tpu.dma_semaphore, #tpu.memory_space<semaphore_mem>>)
    %c4_i32 = arith.constant 4 : i32
    %29 = arith.addi %0, %c4_i32 : i32
    %30 = arith.index_cast %29 : i32 to index
    %31 = memref.load %arg1[%30] : memref<8xi32, #tpu.memory_space<smem>>
    %c4_i32_12 = arith.constant 4 : i32
    %c0_i32_13 = arith.constant 0 : i32
    %32 = tpu.memref_slice %arg2[%31, %c0_i32_13] : memref<64x128xf32, #tpu.memory_space<any>> -> memref<1x128xf32, #tpu.memory_space<any>>
    %33 = tpu.memref_squeeze %32 : memref<1x128xf32, #tpu.memory_space<any>> -> memref<128xf32, #tpu.memory_space<any>>
    %c0_i32_14 = arith.constant 0 : i32
    %34 = tpu.memref_slice %arg3[%c4_i32_12, %c0_i32_14] : memref<8x128xf32, #tpu.memory_space<vmem>> -> memref<1x128xf32, #tpu.memory_space<vmem>>
    %35 = tpu.memref_squeeze %34 : memref<1x128xf32, #tpu.memory_space<vmem>> -> memref<128xf32, #tpu.memory_space<vmem>>
    tpu.enqueue_dma source(%33 : memref<128xf32, #tpu.memory_space<any>>) target(%35 : memref<128xf32, #tpu.memory_space<vmem>>) target_semaphore(%arg4 : memref<!tpu.dma_semaphore, #tpu.memory_space<semaphore_mem>>)
    %c5_i32 = arith.constant 5 : i32
    %36 = arith.addi %0, %c5_i32 : i32
    %37 = arith.index_cast %36 : i32 to index
    %38 = memref.load %arg1[%37] : memref<8xi32, #tpu.memory_space<smem>>
    %c5_i32_15 = arith.constant 5 : i32
    %c0_i32_16 = arith.constant 0 : i32
    %39 = tpu.memref_slice %arg2[%38, %c0_i32_16] : memref<64x128xf32, #tpu.memory_space<any>> -> memref<1x128xf32, #tpu.memory_space<any>>
    %40 = tpu.memref_squeeze %39 : memref<1x128xf32, #tpu.memory_space<any>> -> memref<128xf32, #tpu.memory_space<any>>
    %c0_i32_17 = arith.constant 0 : i32
    %41 = tpu.memref_slice %arg3[%c5_i32_15, %c0_i32_17] : memref<8x128xf32, #tpu.memory_space<vmem>> -> memref<1x128xf32, #tpu.memory_space<vmem>>
    %42 = tpu.memref_squeeze %41 : memref<1x128xf32, #tpu.memory_space<vmem>> -> memref<128xf32, #tpu.memory_space<vmem>>
    tpu.enqueue_dma source(%40 : memref<128xf32, #tpu.memory_space<any>>) target(%42 : memref<128xf32, #tpu.memory_space<vmem>>) target_semaphore(%arg4 : memref<!tpu.dma_semaphore, #tpu.memory_space<semaphore_mem>>)
    %c6_i32 = arith.constant 6 : i32
    %43 = arith.addi %0, %c6_i32 : i32
    %44 = arith.index_cast %43 : i32 to index
    %45 = memref.load %arg1[%44] : memref<8xi32, #tpu.memory_space<smem>>
    %c6_i32_18 = arith.constant 6 : i32
    %c0_i32_19 = arith.constant 0 : i32
    %46 = tpu.memref_slice %arg2[%45, %c0_i32_19] : memref<64x128xf32, #tpu.memory_space<any>> -> memref<1x128xf32, #tpu.memory_space<any>>
    %47 = tpu.memref_squeeze %46 : memref<1x128xf32, #tpu.memory_space<any>> -> memref<128xf32, #tpu.memory_space<any>>
    %c0_i32_20 = arith.constant 0 : i32
    %48 = tpu.memref_slice %arg3[%c6_i32_18, %c0_i32_20] : memref<8x128xf32, #tpu.memory_space<vmem>> -> memref<1x128xf32, #tpu.memory_space<vmem>>
    %49 = tpu.memref_squeeze %48 : memref<1x128xf32, #tpu.memory_space<vmem>> -> memref<128xf32, #tpu.memory_space<vmem>>
    tpu.enqueue_dma source(%47 : memref<128xf32, #tpu.memory_space<any>>) target(%49 : memref<128xf32, #tpu.memory_space<vmem>>) target_semaphore(%arg4 : memref<!tpu.dma_semaphore, #tpu.memory_space<semaphore_mem>>)
    %c7_i32 = arith.constant 7 : i32
    %50 = arith.addi %0, %c7_i32 : i32
    %51 = arith.index_cast %50 : i32 to index
    %52 = memref.load %arg1[%51] : memref<8xi32, #tpu.memory_space<smem>>
    %c7_i32_21 = arith.constant 7 : i32
    %c0_i32_22 = arith.constant 0 : i32
    %53 = tpu.memref_slice %arg2[%52, %c0_i32_22] : memref<64x128xf32, #tpu.memory_space<any>> -> memref<1x128xf32, #tpu.memory_space<any>>
    %54 = tpu.memref_squeeze %53 : memref<1x128xf32, #tpu.memory_space<any>> -> memref<128xf32, #tpu.memory_space<any>>
    %c0_i32_23 = arith.constant 0 : i32
    %55 = tpu.memref_slice %arg3[%c7_i32_21, %c0_i32_23] : memref<8x128xf32, #tpu.memory_space<vmem>> -> memref<1x128xf32, #tpu.memory_space<vmem>>
    %56 = tpu.memref_squeeze %55 : memref<1x128xf32, #tpu.memory_space<vmem>> -> memref<128xf32, #tpu.memory_space<vmem>>
    tpu.enqueue_dma source(%54 : memref<128xf32, #tpu.memory_space<any>>) target(%56 : memref<128xf32, #tpu.memory_space<vmem>>) target_semaphore(%arg4 : memref<!tpu.dma_semaphore, #tpu.memory_space<semaphore_mem>>)
    %c0_i32_24 = arith.constant 0 : i32
    %c8_i32_25 = arith.constant 8 : i32
    %57 = arith.addi %c0_i32_24, %c8_i32_25 : i32
    %c1_i32_26 = arith.constant 1 : i32
    scf.for %arg5 = %c0_i32_24 to %57 step %c1_i32_26  : i32 {
      %c0_i32_27 = arith.constant 0 : i32
      %c0_i32_28 = arith.constant 0 : i32
      %c0_i32_29 = arith.constant 0 : i32
      %58 = tpu.memref_slice %arg2[%c0_i32_27, %c0_i32_29] : memref<64x128xf32, #tpu.memory_space<any>> -> memref<1x128xf32, #tpu.memory_space<any>>
      %59 = tpu.memref_squeeze %58 : memref<1x128xf32, #tpu.memory_space<any>> -> memref<128xf32, #tpu.memory_space<any>>
      %c0_i32_30 = arith.constant 0 : i32
      %60 = tpu.memref_slice %arg3[%c0_i32_28, %c0_i32_30] : memref<8x128xf32, #tpu.memory_space<vmem>> -> memref<1x128xf32, #tpu.memory_space<vmem>>
      %61 = tpu.memref_squeeze %60 : memref<1x128xf32, #tpu.memory_space<vmem>> -> memref<128xf32, #tpu.memory_space<vmem>>
      tpu.wait_dma2 semaphore(%arg4 : memref<!tpu.dma_semaphore, #tpu.memory_space<semaphore_mem>>) src(%59 : memref<128xf32, #tpu.memory_space<any>>) dst(%61 : memref<128xf32, #tpu.memory_space<vmem>>)
    }
    return
  }
  func.func @transform_1(%arg0: i32, %arg1: memref<8xi32, #tpu.memory_space<smem>>) -> (i32, i32) {
    %c0_i32 = arith.constant 0 : i32
    %c0_i32_0 = arith.constant 0 : i32
    return %arg0, %c0_i32 : i32, i32
  }
}

</mosaic_0001>

<llo_original>
// kernel: tpu_custom_call.1
$region0: #{tpu_custom_call.1}
  #allocation0 [shape = 'u32[]', space=smem, size = 0x4, offset = 0x4, fixed_abs, tag = 'smem constant byte address 0x4 - core index']
  #allocation1 [shape = 'u32[144,128]{1,0:T(1,128)}', space=vmem, size = 0x12000, scoped, tag = 'internal scratch']
  #allocation2 [shape = 's32[1]{0}', space=sflag, size = 0x4, scoped, tag = 'scratch operand']
  #allocation3 [shape = 's32[1]{0}', space=sflag, size = 0x4, scoped, tag = 'scoped memory for tpu_custom_call.1']
  #allocation4 [shape = 'u8[512]{0}', space=smem, size = 0x200, scoped, tag = 'prefetched SMEM operand 0']
  #allocation7 [shape = 's32[]', space=sflag, size = 0x4, offset = 0, fixed_abs, tag = 'sflag constant byte address 0x0 - dummy sync flag']
  #allocation8 [shape = 's32[]', space=sflag, size = 0x4, offset = 0, fixed_abs, tag = 'sflag constant byte address 0x0 - dummy sync flag']
  #allocation9 [shape = 'u32[]', space=smem, size = 0x4, offset = 0x44, fixed_abs, tag = 'smem constant byte address 0x44 - assertion arg 0']
  #allocation10 [shape = 'u32[]', space=smem, size = 0x4, offset = 0x48, fixed_abs, tag = 'smem constant byte address 0x48 - assertion arg 1']
  #allocation11 [shape = 's32[]', space=sflag, size = 0x4, offset = 0, fixed_abs, tag = 'sflag constant byte address 0x0 - dummy sync flag']
  #allocation12 [shape = 's32[]', space=sflag, size = 0x4, offset = 0, fixed_abs, tag = 'sflag constant byte address 0x0 - dummy sync flag']
  #allocation13 [shape = 's32[]', space=sflag, size = 0x4, offset = 0, fixed_abs, tag = 'sflag constant byte address 0x0 - dummy sync flag']
  #allocation14 [shape = 's32[]', space=sflag, size = 0x4, offset = 0, fixed_abs, tag = 'sflag constant byte address 0x0 - dummy sync flag']
  #allocation15 [shape = 's32[]', space=sflag, size = 0x4, offset = 0, fixed_abs, tag = 'sflag constant byte address 0x0 - dummy sync flag']
  #allocation16 [shape = 's32[]', space=sflag, size = 0x4, offset = 0, fixed_abs, tag = 'sflag constant byte address 0x0 - dummy sync flag']
  #allocation17 [shape = 's32[]', space=sflag, size = 0x4, offset = 0, fixed_abs, tag = 'sflag constant byte address 0x0 - dummy sync flag']
  #allocation18 [shape = 's32[]', space=sflag, size = 0x4, offset = 0, fixed_abs, tag = 'sflag constant byte address 0x0 - dummy sync flag']
  #allocation19 [shape = 's32[]', space=sflag, size = 0x4, offset = 0, fixed_abs, tag = 'sflag constant byte address 0x0 - dummy sync flag']
  #allocation20 [shape = 's32[]', space=sflag, size = 0x4, offset = 0, fixed_abs, tag = 'sflag constant byte address 0x0 - dummy sync flag']
  #allocation21 [shape = 's32[]', space=sflag, size = 0x4, offset = 0, fixed_abs, tag = 'sflag constant byte address 0x0 - dummy sync flag']
  #allocation22 [shape = 's32[]', space=sflag, size = 0x4, offset = 0, fixed_abs, tag = 'sflag constant byte address 0x0 - dummy sync flag']
  #allocation23 [shape = 's32[]', space=sflag, size = 0x4, offset = 0, fixed_abs, tag = 'sflag constant byte address 0x0 - dummy sync flag']
  #allocation24 [shape = 's32[]', space=sflag, size = 0x4, offset = 0, fixed_abs, tag = 'sflag constant byte address 0x0 - dummy sync flag']
  %s0 = inlined_call_operand.hbm [shape: s32[8], index: 0, kind: input, shape index: {}]
  %s1 = inlined_call_operand.hbm [shape: f32[64,128], index: 1, kind: input, shape index: {}]
  %s2 = inlined_call_operand.hbm [shape: f32[8,128], index: 2, kind: output, shape index: {}]
  %s3 = sld [smem:[#allocation0]]
  $region49: #{tpu_custom_call.1} parent=0
    _
  %s5 = ssub.s32 1, %s3
  %s6 = scalar_select 0, %s5, %s3
  %8 = dma.hbm_to_smem %s0, 16, [#allocation4], [#allocation3]
  %9 = dma.done [#allocation3], 16
  %10 = sfence
  $region1: #{tpu_custom_call.1} parent=0
    #allocation5 [shape = 'u8[4096]{0}', space=vmem, size = 0x1000, scoped, tag = 'output window, operand 0, single buffered']
    #allocation6 [shape = 's32[1]{0}', space=sflag, size = 0x4, scoped, tag = 'scoped memory for tpu_custom_call.1']
    %11 = vsyncpa [#allocation6], 0
    %s12 = smul.u32 0, 8
    %s13 = sld [smem:[#allocation4 + %s12]]
    %s14 = smul.addr %s13, 16
    %s15 = scalar_lea.hbm %s1, %s14
    // Predicated region
    $region2: #{tpu_custom_call.1} parent=1 // pred_check
      _
    $region3: #{tpu_custom_call.1} parent=1 // pred_check_branch
      %17 = sbr.rel target = $region5
    $region4: #{tpu_custom_call.1} parent=1 // pred_region
      %18 = sst [smem:[#allocation9]] [#allocation8]
      %19 = sst [smem:[#allocation10]] [#allocation7]
    $region5: #{tpu_custom_call.1} parent=1 // pred_fallthru
      _
    %21 = shalt.err (0)
    %s23 = sshll.u32 [#allocation5], 4
    %s24 = int_to_ptr.vmem [resolvable:$true] %s23
    %26 = dma.hbm_to_vmem [thread:$0]  %s15, 16, %s24, [#allocation2]
    %s27 = sadd.s32 %s12, 1
    %s28 = sld [smem:[#allocation4 + %s27]]
    %s29 = smul.addr %s28, 16
    %s30 = scalar_lea.hbm %s1, %s29
    %s31 = scalar_lea.vmem [#allocation5], 1
    // Predicated region
    $region6: #{tpu_custom_call.1} parent=1 // pred_check
      _
    $region7: #{tpu_custom_call.1} parent=1 // pred_check_branch
      %33 = sbr.rel target = $region9
    $region8: #{tpu_custom_call.1} parent=1 // pred_region
      %34 = sst [smem:[#allocation9]] [#allocation12]
      %35 = sst [smem:[#allocation10]] [#allocation11]
    $region9: #{tpu_custom_call.1} parent=1 // pred_fallthru
      _
    %37 = shalt.err (0)
    %s39 = sshll.u32 %s31, 4
    %s40 = int_to_ptr.vmem [resolvable:$true] %s39
    %42 = dma.hbm_to_vmem [thread:$0]  %s30, 16, %s40, [#allocation2]
    %s43 = sadd.s32 %s12, 2
    %s44 = sld [smem:[#allocation4 + %s43]]
    %s45 = smul.addr %s44, 16
    %s46 = scalar_lea.hbm %s1, %s45
    %s47 = scalar_lea.vmem [#allocation5], 2
    // Predicated region
    $region10: #{tpu_custom_call.1} parent=1 // pred_check
      _
    $region11: #{tpu_custom_call.1} parent=1 // pred_check_branch
      %49 = sbr.rel target = $region13
    $region12: #{tpu_custom_call.1} parent=1 // pred_region
      %50 = sst [smem:[#allocation9]] [#allocation14]
      %51 = sst [smem:[#allocation10]] [#allocation13]
    $region13: #{tpu_custom_call.1} parent=1 // pred_fallthru
      _
    %53 = shalt.err (0)
    %s55 = sshll.u32 %s47, 4
    %s56 = int_to_ptr.vmem [resolvable:$true] %s55
    %58 = dma.hbm_to_vmem [thread:$0]  %s46, 16, %s56, [#allocation2]
    %s59 = sadd.s32 %s12, 3
    %s60 = sld [smem:[#allocation4 + %s59]]
    %s61 = smul.addr %s60, 16
    %s62 = scalar_lea.hbm %s1, %s61
    %s63 = scalar_lea.vmem [#allocation5], 3
    // Predicated region
    $region14: #{tpu_custom_call.1} parent=1 // pred_check
      _
    $region15: #{tpu_custom_call.1} parent=1 // pred_check_branch
      %65 = sbr.rel target = $region17
    $region16: #{tpu_custom_call.1} parent=1 // pred_region
      %66 = sst [smem:[#allocation9]] [#allocation16]
      %67 = sst [smem:[#allocation10]] [#allocation15]
    $region17: #{tpu_custom_call.1} parent=1 // pred_fallthru
      _
    %69 = shalt.err (0)
    %s71 = sshll.u32 %s63, 4
    %s72 = int_to_ptr.vmem [resolvable:$true] %s71
    %74 = dma.hbm_to_vmem [thread:$0]  %s62, 16, %s72, [#allocation2]
    %s75 = sadd.s32 %s12, 4
    %s76 = sld [smem:[#allocation4 + %s75]]
    %s77 = smul.addr %s76, 16
    %s78 = scalar_lea.hbm %s1, %s77
    %s79 = scalar_lea.vmem [#allocation5], 4
    // Predicated region
    $region18: #{tpu_custom_call.1} parent=1 // pred_check
      _
    $region19: #{tpu_custom_call.1} parent=1 // pred_check_branch
      %81 = sbr.rel target = $region21
    $region20: #{tpu_custom_call.1} parent=1 // pred_region
      %82 = sst [smem:[#allocation9]] [#allocation18]
      %83 = sst [smem:[#allocation10]] [#allocation17]
    $region21: #{tpu_custom_call.1} parent=1 // pred_fallthru
      _
    %85 = shalt.err (0)
    %s87 = sshll.u32 %s79, 4
    %s88 = int_to_ptr.vmem [resolvable:$true] %s87
    %90 = dma.hbm_to_vmem [thread:$0]  %s78, 16, %s88, [#allocation2]
    %s91 = sadd.s32 %s12, 5
    %s92 = sld [smem:[#allocation4 + %s91]]
    %s93 = smul.addr %s92, 16
    %s94 = scalar_lea.hbm %s1, %s93
    %s95 = scalar_lea.vmem [#allocation5], 5
    // Predicated region
    $region22: #{tpu_custom_call.1} parent=1 // pred_check
      _
    $region23: #{tpu_custom_call.1} parent=1 // pred_check_branch
      %97 = sbr.rel target = $region25
    $region24: #{tpu_custom_call.1} parent=1 // pred_region
      %98 = sst [smem:[#allocation9]] [#allocation20]
      %99 = sst [smem:[#allocation10]] [#allocation19]
    $region25: #{tpu_custom_call.1} parent=1 // pred_fallthru
      _
    %101 = shalt.err (0)
    %s103 = sshll.u32 %s95, 4
    %s104 = int_to_ptr.vmem [resolvable:$true] %s103
    %106 = dma.hbm_to_vmem [thread:$0]  %s94, 16, %s104, [#allocation2]
    %s107 = sadd.s32 %s12, 6
    %s108 = sld [smem:[#allocation4 + %s107]]
    %s109 = smul.addr %s108, 16
    %s110 = scalar_lea.hbm %s1, %s109
    %s111 = scalar_lea.vmem [#allocation5], 6
    // Predicated region
    $region26: #{tpu_custom_call.1} parent=1 // pred_check
      _
    $region27: #{tpu_custom_call.1} parent=1 // pred_check_branch
      %113 = sbr.rel target = $region29
    $region28: #{tpu_custom_call.1} parent=1 // pred_region
      %114 = sst [smem:[#allocation9]] [#allocation22]
      %115 = sst [smem:[#allocation10]] [#allocation21]
    $region29: #{tpu_custom_call.1} parent=1 // pred_fallthru
      _
    %117 = shalt.err (0)
    %s119 = sshll.u32 %s111, 4
    %s120 = int_to_ptr.vmem [resolvable:$true] %s119
    %122 = dma.hbm_to_vmem [thread:$0]  %s110, 16, %s120, [#allocation2]
    %s123 = sadd.s32 %s12, 7
    %s124 = sld [smem:[#allocation4 + %s123]]
    %s125 = smul.addr %s124, 16
    %s126 = scalar_lea.hbm %s1, %s125
    %s127 = scalar_lea.vmem [#allocation5], 7
    // Predicated region
    $region30: #{tpu_custom_call.1} parent=1 // pred_check
      _
    $region31: #{tpu_custom_call.1} parent=1 // pred_check_branch
      %129 = sbr.rel target = $region33
    $region32: #{tpu_custom_call.1} parent=1 // pred_region
      %130 = sst [smem:[#allocation9]] [#allocation24]
      %131 = sst [smem:[#allocation10]] [#allocation23]
    $region33: #{tpu_custom_call.1} parent=1 // pred_fallthru
      _
    %133 = shalt.err (0)
    %s135 = sshll.u32 %s127, 4
    %s136 = int_to_ptr.vmem [resolvable:$true] %s135
    %138 = dma.hbm_to_vmem [thread:$0]  %s126, 16, %s136, [#allocation2]
    loop: start=0, step=1, limit=8
    $region34: #{tpu_custom_call.1} parent=1 // loop_pre_header
      _
    $region35: #{tpu_custom_call.1} parent=1 // loop_header
      %s140 = sphi 0, %s144
      %p141 = scmp.ge.s32.totalorder %s140, 8
    $region36: #{tpu_custom_call.1} parent=1 // loop_header_branch
      %143 = sbr.rel (%p141) target = $region40
    $region37: #{tpu_custom_call.1} parent=1 // loop_body
      %146 = dma.done [#allocation2], 16
    $region38: #{tpu_custom_call.1} parent=1 // loop_footer
      %s144 = sadd.s32 1, %s140
    $region39: #{tpu_custom_call.1} parent=1 // loop_footer_branch
      %139 = sbr.rel target = $region35
    $region40: #{tpu_custom_call.1} parent=1 // loop_exit
      _
    // Predicated region
    $region41: #{tpu_custom_call.1} parent=1 // pred_check
      _
    $region42: #{tpu_custom_call.1} parent=1 // pred_check_branch
      %148 = sbr.rel (0) target = $region44
    $region43: #{tpu_custom_call.1} parent=1 // pred_region
      %s150 = ssub.s32 128, 128
      %151 = vsyncadd [#allocation6], %s150
      %s153 = sshll.u32 [#allocation5], 4
      %s154 = int_to_ptr.vmem [resolvable:$true] %s153
      %156 = dma.vmem_to_hbm [thread:$0]  %s154, 128, %s2, [#allocation6]
    $region44: #{tpu_custom_call.1} parent=1 // pred_fallthru
      _
    // Predicated region
    $region45: #{tpu_custom_call.1} parent=1 // pred_check
      _
    $region46: #{tpu_custom_call.1} parent=1 // pred_check_branch
      %158 = sbr.rel (0) target = $region48
    $region47: #{tpu_custom_call.1} parent=1 // pred_region
      %159 = dma.done [#allocation6], 128
    $region48: #{tpu_custom_call.1} parent=1 // pred_fallthru
      _
    %160 = vsyncpa [#allocation6], 1
  %161 = vsyncmov [#allocation2]
  %s162 = vpop.sfrf %161
  %p163 = scmp.eq.s32.totalorder %s162, 0
  %p164 = pneg %p163
  %166 = shalt.err (%p164)

</llo_original>
